<compile_context>
chip_gen: v7x
topology: tpu7x:2x2x1
jax: 0.10.0
libtpu: 0.0.40
codegen_flags: <defaults>
</compile_context>

<pallas_src>
import functools

import jax
import jax.numpy as jnp
from jax.experimental import pallas as pl
from jax.experimental.pallas import tpu as pltpu


def _round_up(x, m):
    return (x + m - 1) // m * m


def _embed_kernel(ids_ref, w_hbm, pos_ref, o_ref, w_vmem, sem, *, tq, seq_pad, vocab):
    # ids_ref: (B * seq_pad,) int32 in SMEM (scalar prefetch)
    # w_hbm:   (V, D) word-embedding table, raw HBM ref (manual gather)
    # pos_ref: (tq, D) positional-embedding tile (BlockSpec-pipelined)
    # o_ref:   (1, tq, D) output tile for (batch b, seq tile si)
    # w_vmem:  (tq, D) VMEM scratch receiving the gathered word rows
    # sem:     (1,) DMA semaphore shared by all row gathers of this tile
    si = pl.program_id(0)
    b = pl.program_id(1)
    base = b * seq_pad + si * tq

    # Issue all tq row gathers back-to-back so many DMAs are in flight.
    @pl.loop(0, tq)
    def _(j):
        tok = ids_ref[base + j]
        tok = jnp.minimum(jnp.maximum(tok, 0), vocab - 1)  # clamp out-of-range ids
        pltpu.make_async_copy(
            w_hbm.at[pl.ds(tok, 1), :],
            w_vmem.at[pl.ds(j, 1), :],
            sem.at[0],
        ).start()

    # All tq row copies signal the same DMA semaphore (byte-counted); a single
    # wait sized as the full (tq, D) scratch consumes exactly their sum.
    pltpu.make_async_copy(w_vmem, w_vmem, sem.at[0]).wait()

    o_ref[0, :, :] = (
        w_vmem[...].astype(jnp.float32) + pos_ref[...].astype(jnp.float32)
    ).astype(o_ref.dtype)


@functools.partial(jax.jit, static_argnames=("tq_target",))
def embedding_forward(ids, word_table, pos_table, *, tq_target=256):
    B, S = ids.shape
    V, D = word_table.shape
    L, _ = pos_table.shape
    assert S <= L, "sequence length must not exceed max_length"

    # Token-tile size: multiple of 8 (sublane-dense), capped by a conservative
    # VMEM budget (scratch + double-buffered pos tile + double-buffered out
    # tile ~ 5 * TQ * D * itemsize) so it also fits v7x's smaller VMEM.
    itemsize = jnp.dtype(word_table.dtype).itemsize
    vmem_budget = 24 * 1024 * 1024
    max_tq = max(8, (vmem_budget // (5 * D * itemsize)) // 8 * 8)
    TQ = int(min(tq_target, _round_up(S, 8), max_tq))

    S_pad = _round_up(S, TQ)
    n_s_tiles = S_pad // TQ

    # Flattened 1-D ids for SMEM scalar prefetch (cheap scalar addressing).
    ids_pad = ids.astype(jnp.int32)
    if S_pad != S:
        ids_pad = jnp.pad(ids_pad, ((0, 0), (0, S_pad - S)))
    ids_flat = ids_pad.reshape(B * S_pad)

    # Positional rows needed for this sequence length (padded to S_pad).
    pos_rows = pos_table[:S]
    if S_pad != S:
        pos_rows = jnp.pad(pos_rows, ((0, S_pad - S), (0, 0)))

    kernel = functools.partial(_embed_kernel, tq=TQ, seq_pad=S_pad, vocab=V)

    grid_spec = pltpu.PrefetchScalarGridSpec(
        num_scalar_prefetch=1,
        # batch innermost -> pos tile block index constant across the batch
        # loop, so Pallas skips the redundant pos re-DMA.
        grid=(n_s_tiles, B),
        in_specs=[
            pl.BlockSpec(memory_space=pl.ANY),                   # word table (HBM)
            pl.BlockSpec((TQ, D), lambda si, b, ids: (si, 0)),   # pos tile
        ],
        out_specs=pl.BlockSpec((1, TQ, D), lambda si, b, ids: (b, si, 0)),
        scratch_shapes=[
            pltpu.VMEM((TQ, D), word_table.dtype),
            pltpu.SemaphoreType.DMA((1,)),
        ],
    )

    out = pl.pallas_call(
        kernel,
        out_shape=jax.ShapeDtypeStruct((B, S_pad, D), word_table.dtype),
        grid_spec=grid_spec,
        compiler_params=pltpu.CompilerParams(
            dimension_semantics=("parallel", "parallel"),
        ),
    )(ids_flat, word_table, pos_rows)

    if S_pad != S:
        out = out[:, :S, :]
    return out


class Embedding:
    """JAX/Pallas equivalent of the PyTorch Embedding module (eval mode)."""

    def __init__(self, vocab_size, max_length, embed_dim, dropout=0.1, key=None):
        if key is None:
            key = jax.random.PRNGKey(0)
        k_w, k_p = jax.random.split(key)
        # nn.Embedding default init: N(0, 1)
        self.word_embed = jax.random.normal(k_w, (vocab_size, embed_dim), jnp.float32)
        self.pos_embed = jax.random.normal(k_p, (max_length, embed_dim), jnp.float32)
        self.dropout_p = dropout  # identity in eval mode

    def __call__(self, x):
        return embedding_forward(x, self.word_embed, self.pos_embed)


if __name__ == "__main__":
    vocab_size = 64
    max_length = 16
    embed_dim = 128
    batch_size = 2
    seq_length = 8

    key = jax.random.PRNGKey(0)
    k_ids, k_params = jax.random.split(key)

    module = Embedding(vocab_size, max_length, embed_dim, dropout=0.1, key=k_params)
    x = jax.random.randint(k_ids, (batch_size, seq_length), 0, vocab_size, jnp.int32)

    out = module(x)
    out = jax.block_until_ready(out)

    # Pure-JAX reference check
    positions = jnp.arange(seq_length)
    ref = module.word_embed[x] + module.pos_embed[positions][None, :, :]
    assert out.shape == (batch_size, seq_length, embed_dim)
    assert jnp.allclose(out, ref, atol=1e-6), "mismatch vs reference"

    print("KERNEL_OK")
</pallas_src>

<mosaic_0001>
module attributes {stable_mosaic.version = 11 : i64} {
  func.func @_embed_kernel(%arg0: i32, %arg1: i32, %arg2: memref<16xi32, #tpu.memory_space<smem>>, %arg3: memref<64x128xf32, #tpu.memory_space<any>>, %arg4: memref<8x128xf32, #tpu.memory_space<vmem>>, %arg5: memref<1x8x128xf32, #tpu.memory_space<vmem>>, %arg6: memref<8x128xf32, #tpu.memory_space<vmem>>, %arg7: memref<1x!tpu.dma_semaphore, #tpu.memory_space<semaphore_mem>>) attributes {dimension_semantics = [#tpu.dimension_semantics<parallel>, #tpu.dimension_semantics<parallel>], iteration_bounds = array<i64: 1, 2>, scalar_prefetch = 1 : i64, scratch_operands = 2 : i64, tpu.core_type = #tpu.core_type<tc>, window_params = [{}, {transform_indices = @transform_1, window_bounds = array<i64: 8, 128>}, {transform_indices = @transform_2, window_bounds = array<i64: 1, 8, 128>}]} {
    %c8_i32 = arith.constant 8 : i32
    %0 = arith.muli %arg1, %c8_i32 : i32
    %c8_i32_0 = arith.constant 8 : i32
    %1 = arith.muli %arg0, %c8_i32_0 : i32
    %2 = arith.addi %0, %1 : i32
    %c0_i32 = arith.constant 0 : i32
    %c8_i32_1 = arith.constant 8 : i32
    %3 = arith.addi %c0_i32, %c8_i32_1 : i32
    %c1_i32 = arith.constant 1 : i32
    scf.for %arg8 = %c0_i32 to %3 step %c1_i32  : i32 {
      %c1_i32_10 = arith.constant 1 : i32
      %12 = arith.muli %arg8, %c1_i32_10 : i32
      %c0_i32_11 = arith.constant 0 : i32
      %13 = arith.addi %c0_i32_11, %12 : i32
      %14 = arith.addi %2, %13 : i32
      %15 = arith.index_cast %14 : i32 to index
      %16 = memref.load %arg2[%15] : memref<16xi32, #tpu.memory_space<smem>>
      %c0_i32_12 = arith.constant 0 : i32
      %17 = arith.maxsi %16, %c0_i32_12 : i32
      %c63_i32 = arith.constant 63 : i32
      %18 = arith.minsi %17, %c63_i32 : i32
      %c0_i32_13 = arith.constant 0 : i32
      %c0_i32_14 = arith.constant 0 : i32
      %19 = tpu.memref_slice %arg3[%18, %c0_i32_14] : memref<64x128xf32, #tpu.memory_space<any>> -> memref<1x128xf32, #tpu.memory_space<any>>
      %c0_i32_15 = arith.constant 0 : i32
      %20 = tpu.memref_slice %arg6[%13, %c0_i32_15] : memref<8x128xf32, #tpu.memory_space<vmem>> -> memref<1x128xf32, #tpu.memory_space<vmem>>
      %21 = tpu.memref_slice %arg7[%c0_i32_13] : memref<1x!tpu.dma_semaphore, #tpu.memory_space<semaphore_mem>> -> memref<1x!tpu.dma_semaphore, #tpu.memory_space<semaphore_mem>>
      %22 = tpu.memref_squeeze %21 : memref<1x!tpu.dma_semaphore, #tpu.memory_space<semaphore_mem>> -> memref<!tpu.dma_semaphore, #tpu.memory_space<semaphore_mem>>
      tpu.enqueue_dma source(%19 : memref<1x128xf32, #tpu.memory_space<any>>) target(%20 : memref<1x128xf32, #tpu.memory_space<vmem>>) target_semaphore(%22 : memref<!tpu.dma_semaphore, #tpu.memory_space<semaphore_mem>>)
    }
    %c8_i32_2 = arith.constant 8 : i32
    %c0_i32_3 = arith.constant 0 : i32
    %4 = tpu.memref_slice %arg7[%c0_i32_3] : memref<1x!tpu.dma_semaphore, #tpu.memory_space<semaphore_mem>> -> memref<1x!tpu.dma_semaphore, #tpu.memory_space<semaphore_mem>>
    %5 = tpu.memref_squeeze %4 : memref<1x!tpu.dma_semaphore, #tpu.memory_space<semaphore_mem>> -> memref<!tpu.dma_semaphore, #tpu.memory_space<semaphore_mem>>
    tpu.wait_dma2 semaphore(%5 : memref<!tpu.dma_semaphore, #tpu.memory_space<semaphore_mem>>) src(%arg6 : memref<8x128xf32, #tpu.memory_space<vmem>>) dst(%arg6 : memref<8x128xf32, #tpu.memory_space<vmem>>)
    %c0 = arith.constant 0 : index
    %c0_4 = arith.constant 0 : index
    %6 = vector.load %arg6[%c0, %c0_4] : memref<8x128xf32, #tpu.memory_space<vmem>>, vector<8x128xf32>
    %c0_5 = arith.constant 0 : index
    %c0_6 = arith.constant 0 : index
    %7 = vector.load %arg4[%c0_5, %c0_6] : memref<8x128xf32, #tpu.memory_space<vmem>>, vector<8x128xf32>
    %8 = arith.addf %6, %7 : vector<8x128xf32>
    %c0_7 = arith.constant 0 : index
    %c0_8 = arith.constant 0 : index
    %c0_9 = arith.constant 0 : index
    %9 = vector.load %arg5[%c0_7, %c0_8, %c0_9] : memref<1x8x128xf32, #tpu.memory_space<vmem>>, vector<1x8x128xf32>
    %10 = vector.shape_cast %9 : vector<1x8x128xf32> to vector<8x128xf32>
    %11 = vector.shape_cast %8 : vector<8x128xf32> to vector<1x8x128xf32>
    tpu.vector_store %arg5[%c0_7, %c0_8, %c0_9], %11 {strides = array<i32>} : memref<1x8x128xf32, #tpu.memory_space<vmem>>, vector<1x8x128xf32>,
    return
  }
  func.func @transform_1(%arg0: i32, %arg1: i32, %arg2: memref<16xi32, #tpu.memory_space<smem>>) -> (i32, i32) {
    %c0_i32 = arith.constant 0 : i32
    %c0_i32_0 = arith.constant 0 : i32
    return %arg0, %c0_i32 : i32, i32
  }
  func.func @transform_2(%arg0: i32, %arg1: i32, %arg2: memref<16xi32, #tpu.memory_space<smem>>) -> (i32, i32, i32) {
    %c0_i32 = arith.constant 0 : i32
    %c0_i32_0 = arith.constant 0 : i32
    return %arg1, %arg0, %c0_i32 : i32, i32, i32
  }
}

</mosaic_0001>

<llo_original>
// kernel: embedding_forward.1
$region0: #{embedding_forward.1}
  #allocation0 [shape = 'u32[]', space=smem, size = 0x4, offset = 0x4, fixed_abs, tag = 'smem constant byte address 0x4 - core index']
  #allocation1 [shape = 'u32[144,128]{1,0:T(1,128)}', space=vmem, size = 0x12000, scoped, tag = 'internal scratch']
  #allocation2 [shape = 'f32[8,128]{1,0:T(8,128)}', space=vmem, size = 0x1000, scoped, tag = 'scratch operand']
  #allocation3 [shape = 's32[1]{0}', space=sflag, size = 0x4, scoped, tag = 'scratch operand']
  #allocation4 [shape = 's32[1]{0}', space=sflag, size = 0x4, scoped, tag = 'scoped memory for embedding_forward.1']
  #allocation5 [shape = 'u8[512]{0}', space=smem, size = 0x200, scoped, tag = 'prefetched SMEM operand 0']
  #allocation8 [shape = 's32[]', space=sflag, size = 0x4, offset = 0, fixed_abs, tag = 'sflag constant byte address 0x0 - dummy sync flag']
  #allocation9 [shape = 's32[]', space=sflag, size = 0x4, offset = 0, fixed_abs, tag = 'sflag constant byte address 0x0 - dummy sync flag']
  #allocation10 [shape = 'u32[]', space=smem, size = 0x4, offset = 0x44, fixed_abs, tag = 'smem constant byte address 0x44 - assertion arg 0']
  #allocation11 [shape = 'u32[]', space=smem, size = 0x4, offset = 0x48, fixed_abs, tag = 'smem constant byte address 0x48 - assertion arg 1']
  %s0 = inlined_call_operand.vmem [shape: s32[16], index: 0, kind: input, shape index: {}]
  %s1 = inlined_call_operand.hbm [shape: f32[64,128], index: 1, kind: input, shape index: {}]
  %s2 = inlined_call_operand.vmem [shape: f32[8,128], index: 2, kind: input, shape index: {}]
  %s3 = inlined_call_operand.hbm [shape: f32[2,8,128], index: 3, kind: output, shape index: {}]
  %s4 = sld [smem:[#allocation0]]
  $region48: #{embedding_forward.1} parent=0
    _
  %s6 = ssub.s32 1, %s4
  %s7 = scalar_select 0, %s6, %s4
  %s8 = sshll.u32 %s0, 4
  %s9 = int_to_ptr.vmem [resolvable:$true] %s8
  %11 = dma.vmem_to_smem %s9, 16, [#allocation5], [#allocation4]
  %12 = dma.done [#allocation4], 16
  %13 = sfence
  $region1: #{embedding_forward.1} parent=0
    #allocation6 [shape = 'u8[8192]{0}', space=vmem, size = 0x2000, scoped, tag = 'output window, operand 0']
    #allocation7 [shape = 's32[2]{0}', space=sflag, size = 0x8, scoped, tag = 'scoped memory for embedding_forward.1']
    %14 = vsyncpa [#allocation7], 0
    %s15 = scalar_lea.sflag [#allocation7], 1
    %16 = vsyncpa %s15, 0
    loop: start=0, step=1, limit=4
    $region2: #{embedding_forward.1} parent=1 // loop_pre_header
      _
    $region3: #{embedding_forward.1} parent=1 // loop_header
      %s18 = sphi 0, %s22
      %p19 = scmp.ge.s32.totalorder %s18, 4
      %s25 = sphi 0, %s37
      %s26 = sphi 0, %s33
      %s27 = sphi 0, %s25
      %s28 = sphi 0, %s26
      %s29 = sphi 0, %s27
      %s30 = sphi 0, %s28
      %s40 = sphi 0, %s42
      %s43 = sphi 0, %s40
      %s44 = sphi 0, %s43
      %s60 = sphi 0, %s44
      %s68 = sphi 0, %s70
      %s71 = sphi 0, %s68
      %s72 = sphi 0, %s71
      %s88 = sphi 0, %s72
    $region4: #{embedding_forward.1} parent=1 // loop_header_branch
      %21 = sbr.rel (%p19) target = $region8
    $region5: #{embedding_forward.1} parent=1 // loop_body
      %s23 = ssub.s32 %s18, 1
      %s24 = ssub.s32 %s18, 2
      %s31 = sadd.s32 1, %s26
      %p32 = scmp.ge.s32.totalorder %s31, 2
      %s33 = scalar_select %p32, 0, %s31
      %s34 = sadd.s32 1, %s25
      %s35 = scalar_select %p32, %s34, %s25
      %p36 = scmp.ge.s32.totalorder %s35, 1
      %s37 = scalar_select %p36, 0, %s35
      %s38 = ssub.s32 %s25, %s37
      %p39 = scmp.eq.s32.totalorder %s38, 0
      %s41 = sadd.s32 %s40, 1
      %s42 = scalar_select %p39, %s40, %s41
      %p45 = pneg %p39
      %p46 = scmp.eq.s32.totalorder %s18, 1
      %p47 = por %p45, %p46
      %p48 = scmp.ne.s32.totalorder %s40, %s43
      %p49 = scmp.eq.s32.totalorder %s18, 0
      %p50 = por %p48, %p49
      %p51 = scmp.ne.s32.totalorder %s40, %s43
      %p52 = scmp.eq.s32.totalorder %s23, 1
      %p53 = por %p51, %p52
      %p54 = scmp.ne.s32.totalorder %s43, %s44
      %p55 = scmp.eq.s32.totalorder %s23, 0
      %p56 = por %p54, %p55
      %p57 = scmp.ne.s32.totalorder %s43, %s44
      %p58 = scmp.eq.s32.totalorder %s24, 1
      %p59 = por %p57, %p58
      %p61 = scmp.ne.s32.totalorder %s44, %s60
      %p62 = scmp.eq.s32.totalorder %s24, 0
      %p63 = por %p61, %p62
      %s64 = ssub.s32 %s26, %s33
      %s65 = ssub.s32 %s25, %s37
      %s66 = sor.u32 %s64, %s65
      %p67 = scmp.eq.s32.totalorder %s66, 0
      %s69 = sadd.s32 %s68, 1
      %s70 = scalar_select %p67, %s68, %s69
      %p73 = pneg %p67
      %p74 = scmp.eq.s32.totalorder %s18, 1
      %p75 = por %p73, %p74
      %p76 = scmp.ne.s32.totalorder %s68, %s71
      %p77 = scmp.eq.s32.totalorder %s18, 0
      %p78 = por %p76, %p77
      %p79 = scmp.ne.s32.totalorder %s68, %s71
      %p80 = scmp.eq.s32.totalorder %s23, 1
      %p81 = por %p79, %p80
      %p82 = scmp.ne.s32.totalorder %s71, %s72
      %p83 = scmp.eq.s32.totalorder %s23, 0
      %p84 = por %p82, %p83
      %p85 = scmp.ne.s32.totalorder %s71, %s72
      %p86 = scmp.eq.s32.totalorder %s24, 1
      %p87 = por %p85, %p86
      %p89 = scmp.ne.s32.totalorder %s72, %s88
      %p90 = scmp.eq.s32.totalorder %s24, 0
      %p91 = por %p89, %p90
      %p92 = scmp.le.s32.totalorder 1, %s18
      %p93 = scmp.lt.s32.totalorder %s18, 3
      %p94 = pnand %p92, %p93
      %p95 = pneg %p94
      // Predicated region
      $region9: #{embedding_forward.1} parent=5 // pred_check
        _
      $region10: #{embedding_forward.1} parent=5 // pred_check_branch
        %97 = sbr.rel (%p94) target = $region12
      $region11: #{embedding_forward.1} parent=5 // pred_region
        %s98 = ssub.s32 %s18, 1
        // Predicated region
        $region13: #{embedding_forward.1} parent=11 // pred_check
          %p99 = pneg %p56
        $region14: #{embedding_forward.1} parent=11 // pred_check_branch
          %101 = sbr.rel (%p99) target = $region16
        $region15: #{embedding_forward.1} parent=11 // pred_region
          %p102 = scmp.lt.s32.totalorder %s27, 0
          %s103 = scalar_select %p102, %s27, 0
          %s104 = smul.addr %s103, 8
          %s105 = scalar_lea.vmem %s2, %s104
        $region16: #{embedding_forward.1} parent=11 // pred_fallthru
          _
      $region12: #{embedding_forward.1} parent=5 // pred_fallthru
        _
      %p106 = scmp.lt.s32.totalorder %s18, 2
      // Predicated region
      $region17: #{embedding_forward.1} parent=5 // pred_check
        %p107 = pneg %p106
      $region18: #{embedding_forward.1} parent=5 // pred_check_branch
        %109 = sbr.rel (%p107) target = $region20
      $region19: #{embedding_forward.1} parent=5 // pred_region
        _
      $region20: #{embedding_forward.1} parent=5 // pred_fallthru
        _
      %p110 = scmp.le.s32.totalorder 1, %s18
      %p111 = scmp.lt.s32.totalorder %s18, 3
      %p112 = pnand %p110, %p111
      %p113 = pneg %p112
      // Predicated region
      $region21: #{embedding_forward.1} parent=5 // pred_check
        _
      $region22: #{embedding_forward.1} parent=5 // pred_check_branch
        %115 = sbr.rel (%p112) target = $region24
      $region23: #{embedding_forward.1} parent=5 // pred_region
        %s116 = ssub.s32 %s18, 1
        %p117 = scmp.lt.s32.totalorder %s27, 0
        %s118 = scalar_select %p117, %s27, 0
        %s119 = smul.addr %s118, 8
        %s120 = scalar_lea.vmem %s2, %s119
        %p121 = pneg %p56
        %p122 = pneg %p53
        %p123 = pneg %p84
        %p124 = pneg %p81
        %s125 = sand.u32 %s71, 1
        %s126 = scalar_lea.sflag [#allocation7], %s125
        %s127 = sand.u32 %s71, 1
        %s128 = smul.addr %s127, 8
        %s129 = scalar_lea.vmem [#allocation6], %s128
        %p130 = scmp.lt.s32.totalorder %s27, 0
        %s131 = scalar_select %p130, %s27, 0
        %s132 = smul.addr %s131, 8
        %s133 = scalar_lea.vmem %s2, %s132
        %s134 = smul.u32 %s28, 8
        %s135 = smul.u32 %s27, 8
        %s136 = sadd.s32 %s134, %s135
        loop: start=0, step=1, limit=8
        $region25: #{embedding_forward.1} parent=23 // loop_pre_header
          _
        $region26: #{embedding_forward.1} parent=23 // loop_header
          %s138 = sphi 0, %s142
          %p139 = scmp.ge.s32.totalorder %s138, 8
        $region27: #{embedding_forward.1} parent=23 // loop_header_branch
          %141 = sbr.rel (%p139) target = $region31
        $region28: #{embedding_forward.1} parent=23 // loop_body
          %s143 = sadd.s32 %s136, %s138
          %s144 = sld [smem:[#allocation5 + %s143]]
          %p145 = scmp.gt.s32.totalorder %s144, 0
          %s146 = scalar_select %p145, %s144, 0
          %p147 = scmp.lt.s32.totalorder %s146, 63
          %s148 = scalar_select %p147, %s146, 63
          %s149 = smul.addr %s148, 16
          %s150 = scalar_lea.hbm %s1, %s149
          %s151 = scalar_lea.vmem [#allocation2], %s138
          // Predicated region
          $region32: #{embedding_forward.1} parent=28 // pred_check
            _
          $region33: #{embedding_forward.1} parent=28 // pred_check_branch
            %153 = sbr.rel target = $region35
          $region34: #{embedding_forward.1} parent=28 // pred_region
            %154 = sst [smem:[#allocation10]] [#allocation9]
            %155 = sst [smem:[#allocation11]] [#allocation8]
          $region35: #{embedding_forward.1} parent=28 // pred_fallthru
            _
          %157 = shalt.err (0)
          %s159 = sshll.u32 %s151, 4
          %s160 = int_to_ptr.vmem [resolvable:$true] %s159
          %162 = dma.hbm_to_vmem [thread:$0]  %s150, 16, %s160, [#allocation3]
        $region29: #{embedding_forward.1} parent=23 // loop_footer
          %s142 = sadd.s32 1, %s138
        $region30: #{embedding_forward.1} parent=23 // loop_footer_branch
          %137 = sbr.rel target = $region26
        $region31: #{embedding_forward.1} parent=23 // loop_exit
          _
        %s163 = smul.u32 8, 1
        %s164 = sshll.u32 %s163, 4
        %165 = dma.done [#allocation3], %s164
        %v166 = vld [vmem:[#allocation2] sm:$0xff]
        %v167 = vld [vmem:[%s133] sm:$0xff]
        %v168 = vadd.f32 %v166, %v167
        %169 = vst [vmem:[%s129] sm:$0xff] %v168
        %s170 = sand.u32 %s71, 1
        %s171 = scalar_lea.sflag [#allocation7], %s170
        %s172 = sand.u32 %s71, 1
        %s173 = smul.addr %s172, 8
        %s174 = scalar_lea.vmem [#allocation6], %s173
        // Predicated region
        $region36: #{embedding_forward.1} parent=23 // pred_check
          %p175 = pneg %p81
        $region37: #{embedding_forward.1} parent=23 // pred_check_branch
          %177 = sbr.rel (%p175) target = $region39
        $region38: #{embedding_forward.1} parent=23 // pred_region
          %s179 = ssub.s32 128, 128
          %180 = vsyncadd %s171, %s179
          %s181 = sadd.s32 %s27, %s28
          %s182 = smul.addr %s181, 128
          %s183 = scalar_lea.hbm %s3, %s182
          %s185 = sshll.u32 %s174, 4
          %s186 = int_to_ptr.vmem [resolvable:$true] %s185
          %188 = dma.vmem_to_hbm [thread:$0]  %s186, 128, %s183, %s171
        $region39: #{embedding_forward.1} parent=23 // pred_fallthru
          _
      $region24: #{embedding_forward.1} parent=5 // pred_fallthru
        _
      %p189 = scmp.le.s32.totalorder 2, %s18
      // Predicated region
      $region40: #{embedding_forward.1} parent=5 // pred_check
        %p190 = pneg %p189
      $region41: #{embedding_forward.1} parent=5 // pred_check_branch
        %192 = sbr.rel (%p190) target = $region43
      $region42: #{embedding_forward.1} parent=5 // pred_region
        %s193 = ssub.s32 %s18, 2
        // Predicated region
        $region44: #{embedding_forward.1} parent=42 // pred_check
          %p194 = pneg %p87
        $region45: #{embedding_forward.1} parent=42 // pred_check_branch
          %196 = sbr.rel (%p194) target = $region47
        $region46: #{embedding_forward.1} parent=42 // pred_region
          %s197 = sand.u32 %s72, 1
          %s198 = scalar_lea.sflag [#allocation7], %s197
          %s199 = sand.u32 %s72, 1
          %s200 = smul.addr %s199, 8
          %s201 = scalar_lea.vmem [#allocation6], %s200
          %202 = dma.done %s198, 128
        $region47: #{embedding_forward.1} parent=42 // pred_fallthru
          _
      $region43: #{embedding_forward.1} parent=5 // pred_fallthru
        _
    $region6: #{embedding_forward.1} parent=1 // loop_footer
      %s22 = sadd.s32 1, %s18
    $region7: #{embedding_forward.1} parent=1 // loop_footer_branch
      %17 = sbr.rel target = $region3
    $region8: #{embedding_forward.1} parent=1 // loop_exit
      _
    %203 = vsyncpa [#allocation7], 1
    %s204 = scalar_lea.sflag [#allocation7], 1
    %205 = vsyncpa %s204, 1
  %206 = vsyncmov [#allocation3]
  %s207 = vpop.sfrf %206
  %p208 = scmp.eq.s32.totalorder %s207, 0
  %p209 = pneg %p208
  %211 = shalt.err (%p209)

</llo_original>
